<compile_context>
chip_gen: v5e
topology: v5e:2x2
jax: 0.10.0
libtpu: 0.0.40
codegen_flags: <defaults>
</compile_context>

<pallas_src>
import functools

import jax
import jax.numpy as jnp
from jax.experimental import pallas as pl
from jax.experimental.pallas import tpu as pltpu


def _contract_kernel(x_ref, o_ref, *, s, compute_dtype, precision):
    # x_ref: (Ct, s*Ht, s*Wt) input tile;  o_ref: (s*s, Ct, Ht, Wt) output tile.
    ct, _, swt = x_ref.shape
    ht, wt = o_ref.shape[2], o_ref.shape[3]

    # One-hot column-gather matrices, built in-registers (cheap VPU iota+compare,
    # off the MXU critical path).   g_s2[p, k] = 1  iff  p == k*s + s2
    p = jax.lax.broadcasted_iota(jnp.int32, (swt, wt), 0)
    k = jax.lax.broadcasted_iota(jnp.int32, (swt, wt), 1)
    q = p - k * s
    gs = [(q == s2).astype(compute_dtype) for s2 in range(s)]

    for s1 in range(s):
        # Row phase: static sublane-strided read (rows s1, s1+s, s1+2s, ...).
        rows = x_ref[:, pl.ds(s1, ht, stride=s), :]            # (Ct, Ht, s*Wt)
        lhs = rows.reshape(ct * ht, swt).astype(compute_dtype)
        for s2 in range(s):
            # Column phase: exact one-hot gather on the MXU, K = s*Wt only.
            y = jnp.dot(lhs, gs[s2],
                        preferred_element_type=jnp.float32,
                        precision=precision)                   # (Ct*Ht, Wt) f32
            o_ref[s1 * s + s2] = y.reshape(ct, ht, wt).astype(o_ref.dtype)


def _pick_tile(full, unit, cap):
    """Largest multiple of `unit` that divides `full` and is <= cap; else `full`."""
    best, t = 0, unit
    while t <= min(full, cap):
        if full % t == 0:
            best = t
        t += unit
    return best if best else full


def contract(x, gain=2):
    N, C, H, W = x.shape
    s = int(gain)
    assert H % s == 0 and W % s == 0, "H and W must be divisible by gain"
    Hs, Ws = H // s, W // s

    if not jnp.issubdtype(x.dtype, jnp.floating):
        # TODO(synk): route integer dtypes through a non-MXU gather path.
        raise NotImplementedError("contract(): floating-point inputs only")

    itemsize = jnp.dtype(x.dtype).itemsize

    # --- tile selection -----------------------------------------------------
    # Lane-dense output tiles (Wt multiple of 128 if Ws allows), sublane-aligned
    # Ht, and Ct sized so the double-buffered (in + out) blocks stay under
    # ~8 MiB, i.e. below every generation's default scoped-VMEM limit.
    Wt = _pick_tile(Ws, 128, 256)
    Ht = _pick_tile(Hs, 8, 128)
    budget = 8 * 1024 * 1024
    per_c = 4 * s * s * Ht * Wt * itemsize      # in+out, double-buffered, per channel
    max_ct = max(1, budget // per_c)
    Ct = 1
    for d in range(1, C + 1):
        if C % d == 0 and d <= max_ct:
            Ct = d

    # --- precision (dtype-gated) ---------------------------------------------
    if x.dtype == jnp.bfloat16:
        compute_dtype, precision = jnp.bfloat16, None              # single pass, exact
    else:
        compute_dtype, precision = jnp.float32, jax.lax.Precision.HIGHEST

    grid = (N, C // Ct, Hs // Ht, Ws // Wt)

    in_spec = pl.BlockSpec(
        (None, Ct, s * Ht, s * Wt),
        lambda n, ci, hi, wi: (n, ci, hi, wi))
    # Output is produced as (N, s*s, C, Hs, Ws) so each grid step writes one
    # contiguous rectangle holding all s*s phases; the phase dim is merged into
    # the channel dim afterwards with a free row-major reshape.
    out_spec = pl.BlockSpec(
        (None, s * s, Ct, Ht, Wt),
        lambda n, ci, hi, wi: (n, 0, ci, hi, wi))

    kernel = functools.partial(_contract_kernel, s=s,
                               compute_dtype=compute_dtype, precision=precision)

    flops = 2 * (s * Wt) * N * C * H * W             # one-hot matmul MACs
    bytes_accessed = 2 * N * C * H * W * itemsize    # read once + write once

    step_bytes = 4 * Ct * s * s * Ht * Wt * itemsize
    cp_kwargs = dict(
        dimension_semantics=("parallel", "parallel", "parallel", "parallel"))
    if step_bytes > 12 * 1024 * 1024:                # only raise above defaults if needed
        cp_kwargs["vmem_limit_bytes"] = int(step_bytes + (4 << 20))

    out5 = pl.pallas_call(
        kernel,
        out_shape=jax.ShapeDtypeStruct((N, s * s, C, Hs, Ws), x.dtype),
        grid=grid,
        in_specs=[in_spec],
        out_specs=out_spec,
        compiler_params=pltpu.CompilerParams(**cp_kwargs),
        cost_estimate=pl.CostEstimate(flops=flops, transcendentals=0,
                                      bytes_accessed=bytes_accessed),
    )(x)

    return out5.reshape(N, C * s * s, Hs, Ws)


def contract_ref(x, gain=2):
    # Pure-JAX transcription of the PyTorch forward (reference for checking).
    N, C, H, W = x.shape
    s = gain
    y = x.reshape(N, C, H // s, s, W // s, s)
    y = jnp.transpose(y, (0, 3, 5, 1, 2, 4))
    return y.reshape(N, C * s * s, H // s, W // s)


if __name__ == "__main__":
    # Primary small test (f32, single tile per image).
    x = jax.random.normal(jax.random.PRNGKey(0), (2, 4, 16, 16), dtype=jnp.float32)
    out = jax.block_until_ready(contract(x, gain=2))
    ref = contract_ref(x, gain=2)
    assert out.shape == ref.shape == (2, 16, 8, 8), out.shape
    assert jnp.allclose(out, ref, rtol=1e-5, atol=1e-6), "mismatch vs reference (small)"

    # Lane-dense / multi-tile path (f32, Wt=256 -> two W tiles per image).
    x2 = jax.random.normal(jax.random.PRNGKey(1), (1, 3, 16, 1024), dtype=jnp.float32)
    out2 = jax.block_until_ready(contract(x2, gain=2))
    assert jnp.allclose(out2, contract_ref(x2, gain=2), rtol=1e-5, atol=1e-6), \
        "mismatch vs reference (tiled)"

    print("KERNEL_OK")
</pallas_src>

<mosaic_0001>
module attributes {stable_mosaic.version = 11 : i64} {
  func.func @_contract_kernel(%arg0: i32, %arg1: i32, %arg2: i32, %arg3: i32, %arg4: memref<1x4x16x16xf32, #tpu.memory_space<vmem>>, %arg5: memref<1x4x4x8x8xf32, #tpu.memory_space<vmem>>) attributes {dimension_semantics = [#tpu.dimension_semantics<parallel>, #tpu.dimension_semantics<parallel>, #tpu.dimension_semantics<parallel>, #tpu.dimension_semantics<parallel>], iteration_bounds = array<i64: 2, 1, 1, 1>, scalar_prefetch = 0 : i64, scratch_operands = 0 : i64, tpu.core_type = #tpu.core_type<tc>, window_params = [{transform_indices = @transform_0, window_bounds = array<i64: 1, 4, 16, 16>}, {transform_indices = @transform_1, window_bounds = array<i64: 1, 4, 4, 8, 8>}]} {
    %0 = tpu.iota {dimensions = array<i32: 0>} : vector<16x8xi32>
    %1 = tpu.iota {dimensions = array<i32: 1>} : vector<16x8xi32>
    %c2_i32 = arith.constant 2 : i32
    %2 = vector.broadcast %c2_i32 : i32 to vector<16x8xi32>
    %3 = arith.muli %1, %2 : vector<16x8xi32>
    %4 = arith.subi %0, %3 : vector<16x8xi32>
    %c0_i32 = arith.constant 0 : i32
    %5 = vector.broadcast %c0_i32 : i32 to vector<16x8xi32>
    %6 = arith.cmpi eq, %4, %5 : vector<16x8xi32>
    %7 = arith.extui %6 : vector<16x8xi1> to vector<16x8xi32>
    %8 = arith.sitofp %7 : vector<16x8xi32> to vector<16x8xf32>
    %c1_i32 = arith.constant 1 : i32
    %9 = vector.broadcast %c1_i32 : i32 to vector<16x8xi32>
    %10 = arith.cmpi eq, %4, %9 : vector<16x8xi32>
    %11 = arith.extui %10 : vector<16x8xi1> to vector<16x8xi32>
    %12 = arith.sitofp %11 : vector<16x8xi32> to vector<16x8xf32>
    %c0 = arith.constant 0 : index
    %c0_0 = arith.constant 0 : index
    %c0_1 = arith.constant 0 : index
    %c0_2 = arith.constant 0 : index
    %13 = tpu.strided_load %arg4[%c0, %c0_0, %c0_1, %c0_2] {strides = array<i32: 1, 1, 2, 1>} : memref<1x4x16x16xf32, #tpu.memory_space<vmem>>, vector<1x4x8x16xf32>
    %14 = vector.shape_cast %13 : vector<1x4x8x16xf32> to vector<4x8x16xf32>
    %15 = vector.shape_cast %14 : vector<4x8x16xf32> to vector<32x16xf32>
    %cst = arith.constant dense<0.000000e+00> : vector<32x8xf32>
    %16 = tpu.matmul %15, %8, %cst {dimension_numbers = #tpu.dot_dimension_numbers<[1], [0], [0], [1], [0, 0, 1, 1], [], []>, precision = #tpu.contract_precision<fp32>} : vector<32x16xf32>, vector<16x8xf32>, vector<32x8xf32> -> vector<32x8xf32>
    %17 = vector.shape_cast %16 : vector<32x8xf32> to vector<4x8x8xf32>
    %c0_3 = arith.constant 0 : index
    %c0_4 = arith.constant 0 : index
    %c0_5 = arith.constant 0 : index
    %c0_6 = arith.constant 0 : index
    %c0_7 = arith.constant 0 : index
    %18 = vector.load %arg5[%c0_3, %c0_4, %c0_5, %c0_6, %c0_7] : memref<1x4x4x8x8xf32, #tpu.memory_space<vmem>>, vector<1x1x4x8x8xf32>
    %19 = vector.shape_cast %18 : vector<1x1x4x8x8xf32> to vector<4x8x8xf32>
    %20 = vector.shape_cast %17 : vector<4x8x8xf32> to vector<1x1x4x8x8xf32>
    tpu.vector_store %arg5[%c0_3, %c0_4, %c0_5, %c0_6, %c0_7], %20 {strides = array<i32>} : memref<1x4x4x8x8xf32, #tpu.memory_space<vmem>>, vector<1x1x4x8x8xf32>,
    %cst_8 = arith.constant dense<0.000000e+00> : vector<32x8xf32>
    %21 = tpu.matmul %15, %12, %cst_8 {dimension_numbers = #tpu.dot_dimension_numbers<[1], [0], [0], [1], [0, 0, 1, 1], [], []>, precision = #tpu.contract_precision<fp32>} : vector<32x16xf32>, vector<16x8xf32>, vector<32x8xf32> -> vector<32x8xf32>
    %22 = vector.shape_cast %21 : vector<32x8xf32> to vector<4x8x8xf32>
    %c0_9 = arith.constant 0 : index
    %c1 = arith.constant 1 : index
    %c0_10 = arith.constant 0 : index
    %c0_11 = arith.constant 0 : index
    %c0_12 = arith.constant 0 : index
    %23 = vector.load %arg5[%c0_9, %c1, %c0_10, %c0_11, %c0_12] : memref<1x4x4x8x8xf32, #tpu.memory_space<vmem>>, vector<1x1x4x8x8xf32>
    %24 = vector.shape_cast %23 : vector<1x1x4x8x8xf32> to vector<4x8x8xf32>
    %25 = vector.shape_cast %22 : vector<4x8x8xf32> to vector<1x1x4x8x8xf32>
    tpu.vector_store %arg5[%c0_9, %c1, %c0_10, %c0_11, %c0_12], %25 {strides = array<i32>} : memref<1x4x4x8x8xf32, #tpu.memory_space<vmem>>, vector<1x1x4x8x8xf32>,
    %c0_13 = arith.constant 0 : index
    %c0_14 = arith.constant 0 : index
    %c1_15 = arith.constant 1 : index
    %c0_16 = arith.constant 0 : index
    %26 = tpu.strided_load %arg4[%c0_13, %c0_14, %c1_15, %c0_16] {strides = array<i32: 1, 1, 2, 1>} : memref<1x4x16x16xf32, #tpu.memory_space<vmem>>, vector<1x4x8x16xf32>
    %27 = vector.shape_cast %26 : vector<1x4x8x16xf32> to vector<4x8x16xf32>
    %28 = vector.shape_cast %27 : vector<4x8x16xf32> to vector<32x16xf32>
    %cst_17 = arith.constant dense<0.000000e+00> : vector<32x8xf32>
    %29 = tpu.matmul %28, %8, %cst_17 {dimension_numbers = #tpu.dot_dimension_numbers<[1], [0], [0], [1], [0, 0, 1, 1], [], []>, precision = #tpu.contract_precision<fp32>} : vector<32x16xf32>, vector<16x8xf32>, vector<32x8xf32> -> vector<32x8xf32>
    %30 = vector.shape_cast %29 : vector<32x8xf32> to vector<4x8x8xf32>
    %c0_18 = arith.constant 0 : index
    %c2 = arith.constant 2 : index
    %c0_19 = arith.constant 0 : index
    %c0_20 = arith.constant 0 : index
    %c0_21 = arith.constant 0 : index
    %31 = vector.load %arg5[%c0_18, %c2, %c0_19, %c0_20, %c0_21] : memref<1x4x4x8x8xf32, #tpu.memory_space<vmem>>, vector<1x1x4x8x8xf32>
    %32 = vector.shape_cast %31 : vector<1x1x4x8x8xf32> to vector<4x8x8xf32>
    %33 = vector.shape_cast %30 : vector<4x8x8xf32> to vector<1x1x4x8x8xf32>
    tpu.vector_store %arg5[%c0_18, %c2, %c0_19, %c0_20, %c0_21], %33 {strides = array<i32>} : memref<1x4x4x8x8xf32, #tpu.memory_space<vmem>>, vector<1x1x4x8x8xf32>,
    %cst_22 = arith.constant dense<0.000000e+00> : vector<32x8xf32>
    %34 = tpu.matmul %28, %12, %cst_22 {dimension_numbers = #tpu.dot_dimension_numbers<[1], [0], [0], [1], [0, 0, 1, 1], [], []>, precision = #tpu.contract_precision<fp32>} : vector<32x16xf32>, vector<16x8xf32>, vector<32x8xf32> -> vector<32x8xf32>
    %35 = vector.shape_cast %34 : vector<32x8xf32> to vector<4x8x8xf32>
    %c0_23 = arith.constant 0 : index
    %c3 = arith.constant 3 : index
    %c0_24 = arith.constant 0 : index
    %c0_25 = arith.constant 0 : index
    %c0_26 = arith.constant 0 : index
    %36 = vector.load %arg5[%c0_23, %c3, %c0_24, %c0_25, %c0_26] : memref<1x4x4x8x8xf32, #tpu.memory_space<vmem>>, vector<1x1x4x8x8xf32>
    %37 = vector.shape_cast %36 : vector<1x1x4x8x8xf32> to vector<4x8x8xf32>
    %38 = vector.shape_cast %35 : vector<4x8x8xf32> to vector<1x1x4x8x8xf32>
    tpu.vector_store %arg5[%c0_23, %c3, %c0_24, %c0_25, %c0_26], %38 {strides = array<i32>} : memref<1x4x4x8x8xf32, #tpu.memory_space<vmem>>, vector<1x1x4x8x8xf32>,
    return
  }
  func.func @transform_0(%arg0: i32, %arg1: i32, %arg2: i32, %arg3: i32) -> (i32, i32, i32, i32) {
    %c0_i32 = arith.constant 0 : i32
    return %arg0, %arg1, %arg2, %arg3 : i32, i32, i32, i32
  }
  func.func @transform_1(%arg0: i32, %arg1: i32, %arg2: i32, %arg3: i32) -> (i32, i32, i32, i32, i32) {
    %c0_i32 = arith.constant 0 : i32
    %c0_i32_0 = arith.constant 0 : i32
    return %arg0, %c0_i32, %arg1, %arg2, %arg3 : i32, i32, i32, i32, i32
  }
}

</mosaic_0001>

<llo_original>
// kernel: tpu_custom_call.1
$region0: #{tpu_custom_call.1}
  #allocation0 [shape = 'u32[]', space=smem, size = 0x4, offset = 0x4, fixed_abs, tag = 'smem constant byte address 0x4 - core index']
  #allocation1 [shape = 'u32[72,128]{1,0:T(1,128)}', space=vmem, size = 0x9000, scoped, tag = 'internal scratch']
  %s0 = inlined_call_operand.hbm [shape: f32[2,4,16,16], index: 0, kind: input, shape index: {}]
  %s1 = inlined_call_operand.hbm [shape: f32[2,4,4,8,8], index: 1, kind: output, shape index: {}]
  %s2 = sld [smem:[#allocation0]]
  $region41: #{tpu_custom_call.1} parent=0
    _
  %s4 = ssub.s32 1, %s2
  %s5 = scalar_select 0, %s4, %s2
  $region1: #{tpu_custom_call.1} parent=0
    #allocation2 [shape = 'u8[65536]{0}', space=vmem, size = 0x10000, scoped, tag = 'input window, operand 0']
    #allocation3 [shape = 's32[2]{0}', space=sflag, size = 0x8, scoped, tag = 'scoped memory for tpu_custom_call.1']
    #allocation4 [shape = 's32[2]{0}', space=sflag, size = 0x8, scoped, tag = 'scoped memory for tpu_custom_call.1']
    #allocation5 [shape = 'u8[131072]{0}', space=vmem, size = 0x20000, scoped, tag = 'output window, operand 0']
    %6 = vsyncpa [#allocation3], 0
    %s7 = scalar_lea.sflag [#allocation3], 1
    %8 = vsyncpa %s7, 0
    %9 = vsyncpa [#allocation4], 0
    %s10 = scalar_lea.sflag [#allocation4], 1
    %11 = vsyncpa %s10, 0
    loop: start=0, step=1, limit=4
    $region2: #{tpu_custom_call.1} parent=1 // loop_pre_header
      _
    $region3: #{tpu_custom_call.1} parent=1 // loop_header
      %s13 = sphi 0, %s17
      %p14 = scmp.ge.s32.totalorder %s13, 4
      %s20 = sphi 0, %s46
      %s21 = sphi 0, %s42
      %s22 = sphi 0, %s38
      %s23 = sphi 0, %s34
      %s24 = sphi 0, %s20
      %s25 = sphi 0, %s21
      %s26 = sphi 0, %s22
      %s27 = sphi 0, %s23
      %s28 = sphi 0, %s24
      %s29 = sphi 0, %s25
      %s30 = sphi 0, %s26
      %s31 = sphi 0, %s27
      %s55 = sphi 0, %s57
      %s58 = sphi 0, %s55
      %s59 = sphi 0, %s58
      %s75 = sphi 0, %s59
      %s87 = sphi 0, %s89
      %s90 = sphi 0, %s87
      %s91 = sphi 0, %s90
      %s107 = sphi 0, %s91
    $region4: #{tpu_custom_call.1} parent=1 // loop_header_branch
      %16 = sbr.rel (%p14) target = $region8
    $region5: #{tpu_custom_call.1} parent=1 // loop_body
      %s18 = ssub.s32 %s13, 1
      %s19 = ssub.s32 %s13, 2
      %s32 = sadd.s32 1, %s23
      %p33 = scmp.ge.s32.totalorder %s32, 1
      %s34 = scalar_select %p33, 0, %s32
      %s35 = sadd.s32 1, %s22
      %s36 = scalar_select %p33, %s35, %s22
      %p37 = scmp.ge.s32.totalorder %s36, 1
      %s38 = scalar_select %p37, 0, %s36
      %s39 = sadd.s32 1, %s21
      %s40 = scalar_select %p37, %s39, %s21
      %p41 = scmp.ge.s32.totalorder %s40, 1
      %s42 = scalar_select %p41, 0, %s40
      %s43 = sadd.s32 1, %s20
      %s44 = scalar_select %p41, %s43, %s20
      %p45 = scmp.ge.s32.totalorder %s44, 2
      %s46 = scalar_select %p45, 0, %s44
      %s47 = ssub.s32 %s20, %s46
      %s48 = ssub.s32 %s21, %s42
      %s49 = sor.u32 %s47, %s48
      %s50 = ssub.s32 %s22, %s38
      %s51 = sor.u32 %s49, %s50
      %s52 = ssub.s32 %s23, %s34
      %s53 = sor.u32 %s51, %s52
      %p54 = scmp.eq.s32.totalorder %s53, 0
      %s56 = sadd.s32 %s55, 1
      %s57 = scalar_select %p54, %s55, %s56
      %p60 = pneg %p54
      %p61 = scmp.eq.s32.totalorder %s13, 1
      %p62 = por %p60, %p61
      %p63 = scmp.ne.s32.totalorder %s55, %s58
      %p64 = scmp.eq.s32.totalorder %s13, 0
      %p65 = por %p63, %p64
      %p66 = scmp.ne.s32.totalorder %s55, %s58
      %p67 = scmp.eq.s32.totalorder %s18, 1
      %p68 = por %p66, %p67
      %p69 = scmp.ne.s32.totalorder %s58, %s59
      %p70 = scmp.eq.s32.totalorder %s18, 0
      %p71 = por %p69, %p70
      %p72 = scmp.ne.s32.totalorder %s58, %s59
      %p73 = scmp.eq.s32.totalorder %s19, 1
      %p74 = por %p72, %p73
      %p76 = scmp.ne.s32.totalorder %s59, %s75
      %p77 = scmp.eq.s32.totalorder %s19, 0
      %p78 = por %p76, %p77
      %s79 = ssub.s32 %s20, %s46
      %s80 = ssub.s32 %s21, %s42
      %s81 = sor.u32 %s79, %s80
      %s82 = ssub.s32 %s22, %s38
      %s83 = sor.u32 %s81, %s82
      %s84 = ssub.s32 %s23, %s34
      %s85 = sor.u32 %s83, %s84
      %p86 = scmp.eq.s32.totalorder %s85, 0
      %s88 = sadd.s32 %s87, 1
      %s89 = scalar_select %p86, %s87, %s88
      %p92 = pneg %p86
      %p93 = scmp.eq.s32.totalorder %s13, 1
      %p94 = por %p92, %p93
      %p95 = scmp.ne.s32.totalorder %s87, %s90
      %p96 = scmp.eq.s32.totalorder %s13, 0
      %p97 = por %p95, %p96
      %p98 = scmp.ne.s32.totalorder %s87, %s90
      %p99 = scmp.eq.s32.totalorder %s18, 1
      %p100 = por %p98, %p99
      %p101 = scmp.ne.s32.totalorder %s90, %s91
      %p102 = scmp.eq.s32.totalorder %s18, 0
      %p103 = por %p101, %p102
      %p104 = scmp.ne.s32.totalorder %s90, %s91
      %p105 = scmp.eq.s32.totalorder %s19, 1
      %p106 = por %p104, %p105
      %p108 = scmp.ne.s32.totalorder %s91, %s107
      %p109 = scmp.eq.s32.totalorder %s19, 0
      %p110 = por %p108, %p109
      %p111 = scmp.le.s32.totalorder 1, %s13
      %p112 = scmp.lt.s32.totalorder %s13, 3
      %p113 = pnand %p111, %p112
      %p114 = pneg %p113
      // Predicated region
      $region9: #{tpu_custom_call.1} parent=5 // pred_check
        _
      $region10: #{tpu_custom_call.1} parent=5 // pred_check_branch
        %116 = sbr.rel (%p113) target = $region12
      $region11: #{tpu_custom_call.1} parent=5 // pred_region
        %s117 = ssub.s32 %s13, 1
      $region12: #{tpu_custom_call.1} parent=5 // pred_fallthru
        _
      %p118 = scmp.lt.s32.totalorder %s13, 2
      // Predicated region
      $region13: #{tpu_custom_call.1} parent=5 // pred_check
        %p119 = pneg %p118
      $region14: #{tpu_custom_call.1} parent=5 // pred_check_branch
        %121 = sbr.rel (%p119) target = $region16
      $region15: #{tpu_custom_call.1} parent=5 // pred_region
        // Predicated region
        $region17: #{tpu_custom_call.1} parent=15 // pred_check
          %p122 = pneg %p65
        $region18: #{tpu_custom_call.1} parent=15 // pred_check_branch
          %124 = sbr.rel (%p122) target = $region20
        $region19: #{tpu_custom_call.1} parent=15 // pred_region
          %s125 = sand.u32 %s55, 1
          %s126 = scalar_lea.sflag [#allocation3], %s125
          %s127 = sand.u32 %s55, 1
          %s128 = smul.addr %s127, 64
          %s129 = scalar_lea.vmem [#allocation2], %s128
          %s130 = smul.u32 4, %s21
          %s131 = smul.u32 2, %s22
          %133 = vsyncadd %s126, 0
          %s134 = sadd.s32 %s23, %s131
          %s135 = smul.addr %s130, 2
          %s136 = sadd.s32 %s134, %s135
          %s137 = smul.addr %s20, 8
          %s138 = sadd.s32 %s136, %s137
          %s139 = smul.addr %s138, 8
          %s140 = scalar_lea.hbm %s0, %s139
          %s141 = sshll.u32 %s140, 4
          %s142 = int_to_ptr.hbm [resolvable:$true] %s141
          %s143 = sshll.u32 %s129, 4
          %s144 = int_to_ptr.vmem [resolvable:$true] %s143
          %149 = dma.hbm_to_vmem [thread:$0]  %s142, 1024, %s144, %s126, 128, 128, 8
        $region20: #{tpu_custom_call.1} parent=15 // pred_fallthru
          _
      $region16: #{tpu_custom_call.1} parent=5 // pred_fallthru
        _
      %p150 = scmp.le.s32.totalorder 1, %s13
      %p151 = scmp.lt.s32.totalorder %s13, 3
      %p152 = pnand %p150, %p151
      %p153 = pneg %p152
      // Predicated region
      $region21: #{tpu_custom_call.1} parent=5 // pred_check
        _
      $region22: #{tpu_custom_call.1} parent=5 // pred_check_branch
        %155 = sbr.rel (%p152) target = $region24
      $region23: #{tpu_custom_call.1} parent=5 // pred_region
        %s156 = ssub.s32 %s13, 1
        %s157 = sand.u32 %s58, 1
        %s158 = scalar_lea.sflag [#allocation3], %s157
        %s159 = sand.u32 %s58, 1
        %s160 = smul.addr %s159, 64
        %s161 = scalar_lea.vmem [#allocation2], %s160
        // Predicated region
        $region25: #{tpu_custom_call.1} parent=23 // pred_check
          %p162 = pneg %p71
        $region26: #{tpu_custom_call.1} parent=23 // pred_check_branch
          %164 = sbr.rel (%p162) target = $region28
        $region27: #{tpu_custom_call.1} parent=23 // pred_region
          %166 = dma.done %s158, 1024
        $region28: #{tpu_custom_call.1} parent=23 // pred_fallthru
          _
        %s167 = sand.u32 %s58, 1
        %s168 = scalar_lea.sflag [#allocation3], %s167
        %s169 = sand.u32 %s58, 1
        %s170 = smul.addr %s169, 64
        %s171 = scalar_lea.vmem [#allocation2], %s170
        %p172 = pneg %p71
        %p173 = pneg %p68
        %p174 = pneg %p103
        %p175 = pneg %p100
        %s176 = sand.u32 %s90, 1
        %s177 = scalar_lea.sflag [#allocation4], %s176
        %s178 = sand.u32 %s90, 1
        %s179 = smul.addr %s178, 128
        %s180 = scalar_lea.vmem [#allocation5], %s179
        %s181 = smul.u32 4, %s25
        %s182 = smul.u32 2, %s26
        %s183 = smul.u32 4, %s25
        %v184 = vlaneseq
        %v185 = vshrl.u32 %v184, 7
        %v186 = vadd.s32 %v185, 8
        %v187 = vlaneseq
        %v188 = vand.u32 %v187, 127
        %v189 = vmul.u32 %v188, 2
        %v190 = vsub.s32 %v185, %v189
        %v191 = vsub.s32 %v186, %v189
        %vm192 = vcmp.eq.s32.totalorder %v190, 0
        %vm193 = vcmp.eq.s32.totalorder %v191, 0
        %v194 = vsel %vm192, 1, 0
        %v195 = vsel %vm193, 1, 0
        %v196 = vcvt.s32.f32 %v194
        %v197 = vcvt.s32.f32 %v195
        %vm198 = vcmp.eq.s32.totalorder %v190, 1
        %vm199 = vcmp.eq.s32.totalorder %v191, 1
        %v200 = vsel %vm198, 1, 0
        %v201 = vsel %vm199, 1, 0
        %v202 = vcvt.s32.f32 %v200
        %v203 = vcvt.s32.f32 %v201
        %v204 = vld [vmem:[%s161] ss:$2 sm:$0xff]
        %s205 = scalar_lea.vmem %s161, 16 [#allocation2]
        %v206 = vld [vmem:[%s205] ss:$2 sm:$0xff]
        %s207 = scalar_lea.vmem %s161, 32 [#allocation2]
        %v208 = vld [vmem:[%s207] ss:$2 sm:$0xff]
        %s209 = scalar_lea.vmem %s161, 48 [#allocation2]
        %v210 = vld [vmem:[%s209] ss:$2 sm:$0xff]
        %vm211 = vcmask 130048
        %v213 = vsel %vm211, %v204, 0
        %v216 = vsel %vm211, %v206, 0
        %v219 = vsel %vm211, %v208, 0
        %v222 = vsel %vm211, %v210, 0
        %224 = vmatpush.msra.mxu0 0.0
        %225 = vmatpush.msra.mxu0 0.0
        %226 = vmatpush.msra.mxu0 0.0
        %227 = vmatpush.msra.mxu0 0.0
        %228 = vmatpush.msra.mxu0 0.0
        %229 = vmatpush.msra.mxu0 0.0
        %230 = vmatpush.msra.mxu0 0.0
        %231 = vmatpush.msra.mxu0 0.0
        %232 = vmatpush.msra.mxu0 0.0
        %233 = vmatpush.msra.mxu0 0.0
        %234 = vmatpush.msra.mxu0 0.0
        %235 = vmatpush.msra.mxu0 0.0
        %236 = vmatpush.msra.mxu0 0.0
        %237 = vmatpush.msra.mxu0 0.0
        %v238 = vand.u32 %v197, 4294901760
        %239 = vmatpush.msra.mxu0 %v238
        %v240 = vand.u32 %v196, 4294901760
        %241 = vmatpush.msra.mxu0 %v240
        %v242 = vand.u32 %v213, 4294901760
        %v243 = vsub.f32 %v213, %v242
        %v244 = vand.u32 %v243, 4294901760
        %v245 = vsub.f32 %v243, %v244
        %v246 = vand.u32 %v245, 4294901760
        %247 = vmatmul.f32.gmra.mxu0 %v246
        %v248 = vpop.f32.mrf.mxu0
        %v249 = vadd.f32 0.0, %v248
        %v250 = vand.u32 %v216, 4294901760
        %v251 = vsub.f32 %v216, %v250
        %v252 = vand.u32 %v251, 4294901760
        %v253 = vsub.f32 %v251, %v252
        %v254 = vand.u32 %v253, 4294901760
        %255 = vmatmul.f32.gmra.mxu0 %v254
        %v256 = vpop.f32.mrf.mxu0
        %v257 = vadd.f32 0.0, %v256
        %v258 = vand.u32 %v219, 4294901760
        %v259 = vsub.f32 %v219, %v258
        %v260 = vand.u32 %v259, 4294901760
        %v261 = vsub.f32 %v259, %v260
        %v262 = vand.u32 %v261, 4294901760
        %263 = vmatmul.f32.gmra.mxu0 %v262
        %v264 = vpop.f32.mrf.mxu0
        %v265 = vadd.f32 0.0, %v264
        %v266 = vand.u32 %v222, 4294901760
        %v267 = vsub.f32 %v222, %v266
        %v268 = vand.u32 %v267, 4294901760
        %v269 = vsub.f32 %v267, %v268
        %v270 = vand.u32 %v269, 4294901760
        %271 = vmatmul.f32.gmra.mxu0 %v270
        %v272 = vpop.f32.mrf.mxu0
        %v273 = vadd.f32 0.0, %v272
        %274 = vdwg.mxu0
        %275 = vmatpush.msra.mxu0 0.0
        %276 = vmatpush.msra.mxu0 0.0
        %277 = vmatpush.msra.mxu0 0.0
        %278 = vmatpush.msra.mxu0 0.0
        %279 = vmatpush.msra.mxu0 0.0
        %280 = vmatpush.msra.mxu0 0.0
        %281 = vmatpush.msra.mxu0 0.0
        %282 = vmatpush.msra.mxu0 0.0
        %283 = vmatpush.msra.mxu0 0.0
        %284 = vmatpush.msra.mxu0 0.0
        %285 = vmatpush.msra.mxu0 0.0
        %286 = vmatpush.msra.mxu0 0.0
        %287 = vmatpush.msra.mxu0 0.0
        %288 = vmatpush.msra.mxu0 0.0
        %v289 = vand.u32 %v197, 4294901760
        %v290 = vsub.f32 %v197, %v289
        %v291 = vand.u32 %v290, 4294901760
        %v292 = vsub.f32 %v290, %v291
        %v293 = vand.u32 %v292, 4294901760
        %294 = vmatpush.msra.mxu0 %v293
        %v295 = vand.u32 %v196, 4294901760
        %v296 = vsub.f32 %v196, %v295
        %v297 = vand.u32 %v296, 4294901760
        %v298 = vsub.f32 %v296, %v297
        %v299 = vand.u32 %v298, 4294901760
        %300 = vmatpush.msra.mxu0 %v299
        %v301 = vand.u32 %v213, 4294901760
        %302 = vmatmul.f32.gmra.mxu0 %v301
        %v303 = vpop.f32.mrf.mxu0
        %v304 = vadd.f32 %v249, %v303
        %v305 = vand.u32 %v216, 4294901760
        %306 = vmatmul.f32.gmra.mxu0 %v305
        %v307 = vpop.f32.mrf.mxu0
        %v308 = vadd.f32 %v257, %v307
        %v309 = vand.u32 %v219, 4294901760
        %310 = vmatmul.f32.gmra.mxu0 %v309
        %v311 = vpop.f32.mrf.mxu0
        %v312 = vadd.f32 %v265, %v311
        %v313 = vand.u32 %v222, 4294901760
        %314 = vmatmul.f32.gmra.mxu0 %v313
        %v315 = vpop.f32.mrf.mxu0
        %v316 = vadd.f32 %v273, %v315
        %317 = vdwg.mxu0
        %318 = vmatpush.msra.mxu0 0.0
        %319 = vmatpush.msra.mxu0 0.0
        %320 = vmatpush.msra.mxu0 0.0
        %321 = vmatpush.msra.mxu0 0.0
        %322 = vmatpush.msra.mxu0 0.0
        %323 = vmatpush.msra.mxu0 0.0
        %324 = vmatpush.msra.mxu0 0.0
        %325 = vmatpush.msra.mxu0 0.0
        %326 = vmatpush.msra.mxu0 0.0
        %327 = vmatpush.msra.mxu0 0.0
        %328 = vmatpush.msra.mxu0 0.0
        %329 = vmatpush.msra.mxu0 0.0
        %330 = vmatpush.msra.mxu0 0.0
        %331 = vmatpush.msra.mxu0 0.0
        %v332 = vand.u32 %v197, 4294901760
        %v333 = vsub.f32 %v197, %v332
        %334 = vmatpush.msra.mxu0 %v333
        %v335 = vand.u32 %v196, 4294901760
        %v336 = vsub.f32 %v196, %v335
        %337 = vmatpush.msra.mxu0 %v336
        %v338 = vand.u32 %v213, 4294901760
        %v339 = vsub.f32 %v213, %v338
        %340 = vmatmul.f32.gmra.mxu0 %v339
        %v341 = vpop.f32.mrf.mxu0
        %v342 = vadd.f32 %v304, %v341
        %v343 = vand.u32 %v216, 4294901760
        %v344 = vsub.f32 %v216, %v343
        %345 = vmatmul.f32.gmra.mxu0 %v344
        %v346 = vpop.f32.mrf.mxu0
        %v347 = vadd.f32 %v308, %v346
        %v348 = vand.u32 %v219, 4294901760
        %v349 = vsub.f32 %v219, %v348
        %350 = vmatmul.f32.gmra.mxu0 %v349
        %v351 = vpop.f32.mrf.mxu0
        %v352 = vadd.f32 %v312, %v351
        %v353 = vand.u32 %v222, 4294901760
        %v354 = vsub.f32 %v222, %v353
        %355 = vmatmul.f32.gmra.mxu0 %v354
        %v356 = vpop.f32.mrf.mxu0
        %v357 = vadd.f32 %v316, %v356
        %358 = vdwg.mxu0
        %359 = vmatpush.msra.mxu0 0.0
        %360 = vmatpush.msra.mxu0 0.0
        %361 = vmatpush.msra.mxu0 0.0
        %362 = vmatpush.msra.mxu0 0.0
        %363 = vmatpush.msra.mxu0 0.0
        %364 = vmatpush.msra.mxu0 0.0
        %365 = vmatpush.msra.mxu0 0.0
        %366 = vmatpush.msra.mxu0 0.0
        %367 = vmatpush.msra.mxu0 0.0
        %368 = vmatpush.msra.mxu0 0.0
        %369 = vmatpush.msra.mxu0 0.0
        %370 = vmatpush.msra.mxu0 0.0
        %371 = vmatpush.msra.mxu0 0.0
        %372 = vmatpush.msra.mxu0 0.0
        %v373 = vand.u32 %v197, 4294901760
        %374 = vmatpush.msra.mxu0 %v373
        %v375 = vand.u32 %v196, 4294901760
        %376 = vmatpush.msra.mxu0 %v375
        %v377 = vand.u32 %v213, 4294901760
        %v378 = vsub.f32 %v213, %v377
        %v379 = vand.u32 %v378, 4294901760
        %380 = vmatmul.f32.gmra.mxu0 %v379
        %v381 = vpop.f32.mrf.mxu0
        %v382 = vadd.f32 %v342, %v381
        %v383 = vand.u32 %v216, 4294901760
        %v384 = vsub.f32 %v216, %v383
        %v385 = vand.u32 %v384, 4294901760
        %386 = vmatmul.f32.gmra.mxu0 %v385
        %v387 = vpop.f32.mrf.mxu0
        %v388 = vadd.f32 %v347, %v387
        %v389 = vand.u32 %v219, 4294901760
        %v390 = vsub.f32 %v219, %v389
        %v391 = vand.u32 %v390, 4294901760
        %392 = vmatmul.f32.gmra.mxu0 %v391
        %v393 = vpop.f32.mrf.mxu0
        %v394 = vadd.f32 %v352, %v393
        %v395 = vand.u32 %v222, 4294901760
        %v396 = vsub.f32 %v222, %v395
        %v397 = vand.u32 %v396, 4294901760
        %398 = vmatmul.f32.gmra.mxu0 %v397
        %v399 = vpop.f32.mrf.mxu0
        %v400 = vadd.f32 %v357, %v399
        %401 = vdwg.mxu0
        %402 = vmatpush.msra.mxu0 0.0
        %403 = vmatpush.msra.mxu0 0.0
        %404 = vmatpush.msra.mxu0 0.0
        %405 = vmatpush.msra.mxu0 0.0
        %406 = vmatpush.msra.mxu0 0.0
        %407 = vmatpush.msra.mxu0 0.0
        %408 = vmatpush.msra.mxu0 0.0
        %409 = vmatpush.msra.mxu0 0.0
        %410 = vmatpush.msra.mxu0 0.0
        %411 = vmatpush.msra.mxu0 0.0
        %412 = vmatpush.msra.mxu0 0.0
        %413 = vmatpush.msra.mxu0 0.0
        %414 = vmatpush.msra.mxu0 0.0
        %415 = vmatpush.msra.mxu0 0.0
        %v416 = vand.u32 %v197, 4294901760
        %v417 = vsub.f32 %v197, %v416
        %v418 = vand.u32 %v417, 4294901760
        %419 = vmatpush.msra.mxu0 %v418
        %v420 = vand.u32 %v196, 4294901760
        %v421 = vsub.f32 %v196, %v420
        %v422 = vand.u32 %v421, 4294901760
        %423 = vmatpush.msra.mxu0 %v422
        %v424 = vand.u32 %v213, 4294901760
        %425 = vmatmul.f32.gmra.mxu0 %v424
        %v426 = vpop.f32.mrf.mxu0
        %v427 = vadd.f32 %v382, %v426
        %v428 = vand.u32 %v216, 4294901760
        %429 = vmatmul.f32.gmra.mxu0 %v428
        %v430 = vpop.f32.mrf.mxu0
        %v431 = vadd.f32 %v388, %v430
        %v432 = vand.u32 %v219, 4294901760
        %433 = vmatmul.f32.gmra.mxu0 %v432
        %v434 = vpop.f32.mrf.mxu0
        %v435 = vadd.f32 %v394, %v434
        %v436 = vand.u32 %v222, 4294901760
        %437 = vmatmul.f32.gmra.mxu0 %v436
        %v438 = vpop.f32.mrf.mxu0
        %v439 = vadd.f32 %v400, %v438
        %440 = vdwg.mxu0
        %441 = vmatpush.msra.mxu0 0.0
        %442 = vmatpush.msra.mxu0 0.0
        %443 = vmatpush.msra.mxu0 0.0
        %444 = vmatpush.msra.mxu0 0.0
        %445 = vmatpush.msra.mxu0 0.0
        %446 = vmatpush.msra.mxu0 0.0
        %447 = vmatpush.msra.mxu0 0.0
        %448 = vmatpush.msra.mxu0 0.0
        %449 = vmatpush.msra.mxu0 0.0
        %450 = vmatpush.msra.mxu0 0.0
        %451 = vmatpush.msra.mxu0 0.0
        %452 = vmatpush.msra.mxu0 0.0
        %453 = vmatpush.msra.mxu0 0.0
        %454 = vmatpush.msra.mxu0 0.0
        %v455 = vand.u32 %v197, 4294901760
        %456 = vmatpush.msra.mxu0 %v455
        %v457 = vand.u32 %v196, 4294901760
        %458 = vmatpush.msra.mxu0 %v457
        %v459 = vand.u32 %v213, 4294901760
        %460 = vmatmul.f32.gmra.mxu0 %v459
        %v461 = vpop.f32.mrf.mxu0
        %v462 = vadd.f32 %v427, %v461
        %v463 = vand.u32 %v216, 4294901760
        %464 = vmatmul.f32.gmra.mxu0 %v463
        %v465 = vpop.f32.mrf.mxu0
        %v466 = vadd.f32 %v431, %v465
        %v467 = vand.u32 %v219, 4294901760
        %468 = vmatmul.f32.gmra.mxu0 %v467
        %v469 = vpop.f32.mrf.mxu0
        %v470 = vadd.f32 %v435, %v469
        %v471 = vand.u32 %v222, 4294901760
        %472 = vmatmul.f32.gmra.mxu0 %v471
        %v473 = vpop.f32.mrf.mxu0
        %v474 = vadd.f32 %v439, %v473
        %475 = vdwg.mxu0
        %vm476 = vcmask 64512
        %477 = vst.msk [vmem:[%s180] sm:$0xff] %vm476, %v462
        %478 = vst.msk [vmem:[%s180 + $0x8] sm:$0xff] %vm476, %v466
        %479 = vst.msk [vmem:[%s180 + $0x10] sm:$0xff] %vm476, %v470
        %480 = vst.msk [vmem:[%s180 + $0x18] sm:$0xff] %vm476, %v474
        %481 = vmatpush.msra.mxu0 0.0
        %482 = vmatpush.msra.mxu0 0.0
        %483 = vmatpush.msra.mxu0 0.0
        %484 = vmatpush.msra.mxu0 0.0
        %485 = vmatpush.msra.mxu0 0.0
        %486 = vmatpush.msra.mxu0 0.0
        %487 = vmatpush.msra.mxu0 0.0
        %488 = vmatpush.msra.mxu0 0.0
        %489 = vmatpush.msra.mxu0 0.0
        %490 = vmatpush.msra.mxu0 0.0
        %491 = vmatpush.msra.mxu0 0.0
        %492 = vmatpush.msra.mxu0 0.0
        %493 = vmatpush.msra.mxu0 0.0
        %494 = vmatpush.msra.mxu0 0.0
        %v495 = vand.u32 %v203, 4294901760
        %496 = vmatpush.msra.mxu0 %v495
        %v497 = vand.u32 %v202, 4294901760
        %498 = vmatpush.msra.mxu0 %v497
        %v499 = vand.u32 %v213, 4294901760
        %v500 = vsub.f32 %v213, %v499
        %v501 = vand.u32 %v500, 4294901760
        %v502 = vsub.f32 %v500, %v501
        %v503 = vand.u32 %v502, 4294901760
        %504 = vmatmul.f32.gmra.mxu0 %v503
        %v505 = vpop.f32.mrf.mxu0
        %v506 = vadd.f32 0.0, %v505
        %v507 = vand.u32 %v216, 4294901760
        %v508 = vsub.f32 %v216, %v507
        %v509 = vand.u32 %v508, 4294901760
        %v510 = vsub.f32 %v508, %v509
        %v511 = vand.u32 %v510, 4294901760
        %512 = vmatmul.f32.gmra.mxu0 %v511
        %v513 = vpop.f32.mrf.mxu0
        %v514 = vadd.f32 0.0, %v513
        %v515 = vand.u32 %v219, 4294901760
        %v516 = vsub.f32 %v219, %v515
        %v517 = vand.u32 %v516, 4294901760
        %v518 = vsub.f32 %v516, %v517
        %v519 = vand.u32 %v518, 4294901760
        %520 = vmatmul.f32.gmra.mxu0 %v519
        %v521 = vpop.f32.mrf.mxu0
        %v522 = vadd.f32 0.0, %v521
        %v523 = vand.u32 %v222, 4294901760
        %v524 = vsub.f32 %v222, %v523
        %v525 = vand.u32 %v524, 4294901760
        %v526 = vsub.f32 %v524, %v525
        %v527 = vand.u32 %v526, 4294901760
        %528 = vmatmul.f32.gmra.mxu0 %v527
        %v529 = vpop.f32.mrf.mxu0
        %v530 = vadd.f32 0.0, %v529
        %531 = vdwg.mxu0
        %532 = vmatpush.msra.mxu0 0.0
        %533 = vmatpush.msra.mxu0 0.0
        %534 = vmatpush.msra.mxu0 0.0
        %535 = vmatpush.msra.mxu0 0.0
        %536 = vmatpush.msra.mxu0 0.0
        %537 = vmatpush.msra.mxu0 0.0
        %538 = vmatpush.msra.mxu0 0.0
        %539 = vmatpush.msra.mxu0 0.0
        %540 = vmatpush.msra.mxu0 0.0
        %541 = vmatpush.msra.mxu0 0.0
        %542 = vmatpush.msra.mxu0 0.0
        %543 = vmatpush.msra.mxu0 0.0
        %544 = vmatpush.msra.mxu0 0.0
        %545 = vmatpush.msra.mxu0 0.0
        %v546 = vand.u32 %v203, 4294901760
        %v547 = vsub.f32 %v203, %v546
        %v548 = vand.u32 %v547, 4294901760
        %v549 = vsub.f32 %v547, %v548
        %v550 = vand.u32 %v549, 4294901760
        %551 = vmatpush.msra.mxu0 %v550
        %v552 = vand.u32 %v202, 4294901760
        %v553 = vsub.f32 %v202, %v552
        %v554 = vand.u32 %v553, 4294901760
        %v555 = vsub.f32 %v553, %v554
        %v556 = vand.u32 %v555, 4294901760
        %557 = vmatpush.msra.mxu0 %v556
        %v558 = vand.u32 %v213, 4294901760
        %559 = vmatmul.f32.gmra.mxu0 %v558
        %v560 = vpop.f32.mrf.mxu0
        %v561 = vadd.f32 %v506, %v560
        %v562 = vand.u32 %v216, 4294901760
        %563 = vmatmul.f32.gmra.mxu0 %v562
        %v564 = vpop.f32.mrf.mxu0
        %v565 = vadd.f32 %v514, %v564
        %v566 = vand.u32 %v219, 4294901760
        %567 = vmatmul.f32.gmra.mxu0 %v566
        %v568 = vpop.f32.mrf.mxu0
        %v569 = vadd.f32 %v522, %v568
        %v570 = vand.u32 %v222, 4294901760
        %571 = vmatmul.f32.gmra.mxu0 %v570
        %v572 = vpop.f32.mrf.mxu0
        %v573 = vadd.f32 %v530, %v572
        %574 = vdwg.mxu0
        %575 = vmatpush.msra.mxu0 0.0
        %576 = vmatpush.msra.mxu0 0.0
        %577 = vmatpush.msra.mxu0 0.0
        %578 = vmatpush.msra.mxu0 0.0
        %579 = vmatpush.msra.mxu0 0.0
        %580 = vmatpush.msra.mxu0 0.0
        %581 = vmatpush.msra.mxu0 0.0
        %582 = vmatpush.msra.mxu0 0.0
        %583 = vmatpush.msra.mxu0 0.0
        %584 = vmatpush.msra.mxu0 0.0
        %585 = vmatpush.msra.mxu0 0.0
        %586 = vmatpush.msra.mxu0 0.0
        %587 = vmatpush.msra.mxu0 0.0
        %588 = vmatpush.msra.mxu0 0.0
        %v589 = vand.u32 %v203, 4294901760
        %v590 = vsub.f32 %v203, %v589
        %591 = vmatpush.msra.mxu0 %v590
        %v592 = vand.u32 %v202, 4294901760
        %v593 = vsub.f32 %v202, %v592
        %594 = vmatpush.msra.mxu0 %v593
        %v595 = vand.u32 %v213, 4294901760
        %v596 = vsub.f32 %v213, %v595
        %597 = vmatmul.f32.gmra.mxu0 %v596
        %v598 = vpop.f32.mrf.mxu0
        %v599 = vadd.f32 %v561, %v598
        %v600 = vand.u32 %v216, 4294901760
        %v601 = vsub.f32 %v216, %v600
        %602 = vmatmul.f32.gmra.mxu0 %v601
        %v603 = vpop.f32.mrf.mxu0
        %v604 = vadd.f32 %v565, %v603
        %v605 = vand.u32 %v219, 4294901760
        %v606 = vsub.f32 %v219, %v605
        %607 = vmatmul.f32.gmra.mxu0 %v606
        %v608 = vpop.f32.mrf.mxu0
        %v609 = vadd.f32 %v569, %v608
        %v610 = vand.u32 %v222, 4294901760
        %v611 = vsub.f32 %v222, %v610
        %612 = vmatmul.f32.gmra.mxu0 %v611
        %v613 = vpop.f32.mrf.mxu0
        %v614 = vadd.f32 %v573, %v613
        %615 = vdwg.mxu0
        %616 = vmatpush.msra.mxu0 0.0
        %617 = vmatpush.msra.mxu0 0.0
        %618 = vmatpush.msra.mxu0 0.0
        %619 = vmatpush.msra.mxu0 0.0
        %620 = vmatpush.msra.mxu0 0.0
        %621 = vmatpush.msra.mxu0 0.0
        %622 = vmatpush.msra.mxu0 0.0
        %623 = vmatpush.msra.mxu0 0.0
        %624 = vmatpush.msra.mxu0 0.0
        %625 = vmatpush.msra.mxu0 0.0
        %626 = vmatpush.msra.mxu0 0.0
        %627 = vmatpush.msra.mxu0 0.0
        %628 = vmatpush.msra.mxu0 0.0
        %629 = vmatpush.msra.mxu0 0.0
        %v630 = vand.u32 %v203, 4294901760
        %631 = vmatpush.msra.mxu0 %v630
        %v632 = vand.u32 %v202, 4294901760
        %633 = vmatpush.msra.mxu0 %v632
        %v634 = vand.u32 %v213, 4294901760
        %v635 = vsub.f32 %v213, %v634
        %v636 = vand.u32 %v635, 4294901760
        %637 = vmatmul.f32.gmra.mxu0 %v636
        %v638 = vpop.f32.mrf.mxu0
        %v639 = vadd.f32 %v599, %v638
        %v640 = vand.u32 %v216, 4294901760
        %v641 = vsub.f32 %v216, %v640
        %v642 = vand.u32 %v641, 4294901760
        %643 = vmatmul.f32.gmra.mxu0 %v642
        %v644 = vpop.f32.mrf.mxu0
        %v645 = vadd.f32 %v604, %v644
        %v646 = vand.u32 %v219, 4294901760
        %v647 = vsub.f32 %v219, %v646
        %v648 = vand.u32 %v647, 4294901760
        %649 = vmatmul.f32.gmra.mxu0 %v648
        %v650 = vpop.f32.mrf.mxu0
        %v651 = vadd.f32 %v609, %v650
        %v652 = vand.u32 %v222, 4294901760
        %v653 = vsub.f32 %v222, %v652
        %v654 = vand.u32 %v653, 4294901760
        %655 = vmatmul.f32.gmra.mxu0 %v654
        %v656 = vpop.f32.mrf.mxu0
        %v657 = vadd.f32 %v614, %v656
        %658 = vdwg.mxu0
        %659 = vmatpush.msra.mxu0 0.0
        %660 = vmatpush.msra.mxu0 0.0
        %661 = vmatpush.msra.mxu0 0.0
        %662 = vmatpush.msra.mxu0 0.0
        %663 = vmatpush.msra.mxu0 0.0
        %664 = vmatpush.msra.mxu0 0.0
        %665 = vmatpush.msra.mxu0 0.0
        %666 = vmatpush.msra.mxu0 0.0
        %667 = vmatpush.msra.mxu0 0.0
        %668 = vmatpush.msra.mxu0 0.0
        %669 = vmatpush.msra.mxu0 0.0
        %670 = vmatpush.msra.mxu0 0.0
        %671 = vmatpush.msra.mxu0 0.0
        %672 = vmatpush.msra.mxu0 0.0
        %v673 = vand.u32 %v203, 4294901760
        %v674 = vsub.f32 %v203, %v673
        %v675 = vand.u32 %v674, 4294901760
        %676 = vmatpush.msra.mxu0 %v675
        %v677 = vand.u32 %v202, 4294901760
        %v678 = vsub.f32 %v202, %v677
        %v679 = vand.u32 %v678, 4294901760
        %680 = vmatpush.msra.mxu0 %v679
        %v681 = vand.u32 %v213, 4294901760
        %682 = vmatmul.f32.gmra.mxu0 %v681
        %v683 = vpop.f32.mrf.mxu0
        %v684 = vadd.f32 %v639, %v683
        %v685 = vand.u32 %v216, 4294901760
        %686 = vmatmul.f32.gmra.mxu0 %v685
        %v687 = vpop.f32.mrf.mxu0
        %v688 = vadd.f32 %v645, %v687
        %v689 = vand.u32 %v219, 4294901760
        %690 = vmatmul.f32.gmra.mxu0 %v689
        %v691 = vpop.f32.mrf.mxu0
        %v692 = vadd.f32 %v651, %v691
        %v693 = vand.u32 %v222, 4294901760
        %694 = vmatmul.f32.gmra.mxu0 %v693
        %v695 = vpop.f32.mrf.mxu0
        %v696 = vadd.f32 %v657, %v695
        %697 = vdwg.mxu0
        %698 = vmatpush.msra.mxu0 0.0
        %699 = vmatpush.msra.mxu0 0.0
        %700 = vmatpush.msra.mxu0 0.0
        %701 = vmatpush.msra.mxu0 0.0
        %702 = vmatpush.msra.mxu0 0.0
        %703 = vmatpush.msra.mxu0 0.0
        %704 = vmatpush.msra.mxu0 0.0
        %705 = vmatpush.msra.mxu0 0.0
        %706 = vmatpush.msra.mxu0 0.0
        %707 = vmatpush.msra.mxu0 0.0
        %708 = vmatpush.msra.mxu0 0.0
        %709 = vmatpush.msra.mxu0 0.0
        %710 = vmatpush.msra.mxu0 0.0
        %711 = vmatpush.msra.mxu0 0.0
        %v712 = vand.u32 %v203, 4294901760
        %713 = vmatpush.msra.mxu0 %v712
        %v714 = vand.u32 %v202, 4294901760
        %715 = vmatpush.msra.mxu0 %v714
        %v716 = vand.u32 %v213, 4294901760
        %717 = vmatmul.f32.gmra.mxu0 %v716
        %v718 = vpop.f32.mrf.mxu0
        %v719 = vadd.f32 %v684, %v718
        %v720 = vand.u32 %v216, 4294901760
        %721 = vmatmul.f32.gmra.mxu0 %v720
        %v722 = vpop.f32.mrf.mxu0
        %v723 = vadd.f32 %v688, %v722
        %v724 = vand.u32 %v219, 4294901760
        %725 = vmatmul.f32.gmra.mxu0 %v724
        %v726 = vpop.f32.mrf.mxu0
        %v727 = vadd.f32 %v692, %v726
        %v728 = vand.u32 %v222, 4294901760
        %729 = vmatmul.f32.gmra.mxu0 %v728
        %v730 = vpop.f32.mrf.mxu0
        %v731 = vadd.f32 %v696, %v730
        %732 = vdwg.mxu0
        %s733 = scalar_lea.vmem %s180, 32 [#allocation5]
        %734 = vst.msk [vmem:[%s733] sm:$0xff] %vm476, %v719
        %735 = vst.msk [vmem:[%s733 + $0x8] sm:$0xff] %vm476, %v723
        %736 = vst.msk [vmem:[%s733 + $0x10] sm:$0xff] %vm476, %v727
        %737 = vst.msk [vmem:[%s733 + $0x18] sm:$0xff] %vm476, %v731
        %s738 = scalar_lea.vmem %s161, 1 [#allocation2]
        %v739 = vld [vmem:[%s738] ss:$2 sm:$0xff]
        %s740 = scalar_lea.vmem %s161, 17 [#allocation2]
        %v741 = vld [vmem:[%s740] ss:$2 sm:$0xff]
        %s742 = scalar_lea.vmem %s161, 33 [#allocation2]
        %v743 = vld [vmem:[%s742] ss:$2 sm:$0xff]
        %s744 = scalar_lea.vmem %s161, 49 [#allocation2]
        %v745 = vld [vmem:[%s744] ss:$2 sm:$0xff]
        %v747 = vsel %vm211, %v739, 0
        %v750 = vsel %vm211, %v741, 0
        %v753 = vsel %vm211, %v743, 0
        %v756 = vsel %vm211, %v745, 0
        %758 = vmatpush.msra.mxu0 0.0
        %759 = vmatpush.msra.mxu0 0.0
        %760 = vmatpush.msra.mxu0 0.0
        %761 = vmatpush.msra.mxu0 0.0
        %762 = vmatpush.msra.mxu0 0.0
        %763 = vmatpush.msra.mxu0 0.0
        %764 = vmatpush.msra.mxu0 0.0
        %765 = vmatpush.msra.mxu0 0.0
        %766 = vmatpush.msra.mxu0 0.0
        %767 = vmatpush.msra.mxu0 0.0
        %768 = vmatpush.msra.mxu0 0.0
        %769 = vmatpush.msra.mxu0 0.0
        %770 = vmatpush.msra.mxu0 0.0
        %771 = vmatpush.msra.mxu0 0.0
        %v772 = vand.u32 %v197, 4294901760
        %773 = vmatpush.msra.mxu0 %v772
        %v774 = vand.u32 %v196, 4294901760
        %775 = vmatpush.msra.mxu0 %v774
        %v776 = vand.u32 %v747, 4294901760
        %v777 = vsub.f32 %v747, %v776
        %v778 = vand.u32 %v777, 4294901760
        %v779 = vsub.f32 %v777, %v778
        %v780 = vand.u32 %v779, 4294901760
        %781 = vmatmul.f32.gmra.mxu0 %v780
        %v782 = vpop.f32.mrf.mxu0
        %v783 = vadd.f32 0.0, %v782
        %v784 = vand.u32 %v750, 4294901760
        %v785 = vsub.f32 %v750, %v784
        %v786 = vand.u32 %v785, 4294901760
        %v787 = vsub.f32 %v785, %v786
        %v788 = vand.u32 %v787, 4294901760
        %789 = vmatmul.f32.gmra.mxu0 %v788
        %v790 = vpop.f32.mrf.mxu0
        %v791 = vadd.f32 0.0, %v790
        %v792 = vand.u32 %v753, 4294901760
        %v793 = vsub.f32 %v753, %v792
        %v794 = vand.u32 %v793, 4294901760
        %v795 = vsub.f32 %v793, %v794
        %v796 = vand.u32 %v795, 4294901760
        %797 = vmatmul.f32.gmra.mxu0 %v796
        %v798 = vpop.f32.mrf.mxu0
        %v799 = vadd.f32 0.0, %v798
        %v800 = vand.u32 %v756, 4294901760
        %v801 = vsub.f32 %v756, %v800
        %v802 = vand.u32 %v801, 4294901760
        %v803 = vsub.f32 %v801, %v802
        %v804 = vand.u32 %v803, 4294901760
        %805 = vmatmul.f32.gmra.mxu0 %v804
        %v806 = vpop.f32.mrf.mxu0
        %v807 = vadd.f32 0.0, %v806
        %808 = vdwg.mxu0
        %809 = vmatpush.msra.mxu0 0.0
        %810 = vmatpush.msra.mxu0 0.0
        %811 = vmatpush.msra.mxu0 0.0
        %812 = vmatpush.msra.mxu0 0.0
        %813 = vmatpush.msra.mxu0 0.0
        %814 = vmatpush.msra.mxu0 0.0
        %815 = vmatpush.msra.mxu0 0.0
        %816 = vmatpush.msra.mxu0 0.0
        %817 = vmatpush.msra.mxu0 0.0
        %818 = vmatpush.msra.mxu0 0.0
        %819 = vmatpush.msra.mxu0 0.0
        %820 = vmatpush.msra.mxu0 0.0
        %821 = vmatpush.msra.mxu0 0.0
        %822 = vmatpush.msra.mxu0 0.0
        %v823 = vand.u32 %v197, 4294901760
        %v824 = vsub.f32 %v197, %v823
        %v825 = vand.u32 %v824, 4294901760
        %v826 = vsub.f32 %v824, %v825
        %v827 = vand.u32 %v826, 4294901760
        %828 = vmatpush.msra.mxu0 %v827
        %v829 = vand.u32 %v196, 4294901760
        %v830 = vsub.f32 %v196, %v829
        %v831 = vand.u32 %v830, 4294901760
        %v832 = vsub.f32 %v830, %v831
        %v833 = vand.u32 %v832, 4294901760
        %834 = vmatpush.msra.mxu0 %v833
        %v835 = vand.u32 %v747, 4294901760
        %836 = vmatmul.f32.gmra.mxu0 %v835
        %v837 = vpop.f32.mrf.mxu0
        %v838 = vadd.f32 %v783, %v837
        %v839 = vand.u32 %v750, 4294901760
        %840 = vmatmul.f32.gmra.mxu0 %v839
        %v841 = vpop.f32.mrf.mxu0
        %v842 = vadd.f32 %v791, %v841
        %v843 = vand.u32 %v753, 4294901760
        %844 = vmatmul.f32.gmra.mxu0 %v843
        %v845 = vpop.f32.mrf.mxu0
        %v846 = vadd.f32 %v799, %v845
        %v847 = vand.u32 %v756, 4294901760
        %848 = vmatmul.f32.gmra.mxu0 %v847
        %v849 = vpop.f32.mrf.mxu0
        %v850 = vadd.f32 %v807, %v849
        %851 = vdwg.mxu0
        %852 = vmatpush.msra.mxu0 0.0
        %853 = vmatpush.msra.mxu0 0.0
        %854 = vmatpush.msra.mxu0 0.0
        %855 = vmatpush.msra.mxu0 0.0
        %856 = vmatpush.msra.mxu0 0.0
        %857 = vmatpush.msra.mxu0 0.0
        %858 = vmatpush.msra.mxu0 0.0
        %859 = vmatpush.msra.mxu0 0.0
        %860 = vmatpush.msra.mxu0 0.0
        %861 = vmatpush.msra.mxu0 0.0
        %862 = vmatpush.msra.mxu0 0.0
        %863 = vmatpush.msra.mxu0 0.0
        %864 = vmatpush.msra.mxu0 0.0
        %865 = vmatpush.msra.mxu0 0.0
        %v866 = vand.u32 %v197, 4294901760
        %v867 = vsub.f32 %v197, %v866
        %868 = vmatpush.msra.mxu0 %v867
        %v869 = vand.u32 %v196, 4294901760
        %v870 = vsub.f32 %v196, %v869
        %871 = vmatpush.msra.mxu0 %v870
        %v872 = vand.u32 %v747, 4294901760
        %v873 = vsub.f32 %v747, %v872
        %874 = vmatmul.f32.gmra.mxu0 %v873
        %v875 = vpop.f32.mrf.mxu0
        %v876 = vadd.f32 %v838, %v875
        %v877 = vand.u32 %v750, 4294901760
        %v878 = vsub.f32 %v750, %v877
        %879 = vmatmul.f32.gmra.mxu0 %v878
        %v880 = vpop.f32.mrf.mxu0
        %v881 = vadd.f32 %v842, %v880
        %v882 = vand.u32 %v753, 4294901760
        %v883 = vsub.f32 %v753, %v882
        %884 = vmatmul.f32.gmra.mxu0 %v883
        %v885 = vpop.f32.mrf.mxu0
        %v886 = vadd.f32 %v846, %v885
        %v887 = vand.u32 %v756, 4294901760
        %v888 = vsub.f32 %v756, %v887
        %889 = vmatmul.f32.gmra.mxu0 %v888
        %v890 = vpop.f32.mrf.mxu0
        %v891 = vadd.f32 %v850, %v890
        %892 = vdwg.mxu0
        %893 = vmatpush.msra.mxu0 0.0
        %894 = vmatpush.msra.mxu0 0.0
        %895 = vmatpush.msra.mxu0 0.0
        %896 = vmatpush.msra.mxu0 0.0
        %897 = vmatpush.msra.mxu0 0.0
        %898 = vmatpush.msra.mxu0 0.0
        %899 = vmatpush.msra.mxu0 0.0
        %900 = vmatpush.msra.mxu0 0.0
        %901 = vmatpush.msra.mxu0 0.0
        %902 = vmatpush.msra.mxu0 0.0
        %903 = vmatpush.msra.mxu0 0.0
        %904 = vmatpush.msra.mxu0 0.0
        %905 = vmatpush.msra.mxu0 0.0
        %906 = vmatpush.msra.mxu0 0.0
        %v907 = vand.u32 %v197, 4294901760
        %908 = vmatpush.msra.mxu0 %v907
        %v909 = vand.u32 %v196, 4294901760
        %910 = vmatpush.msra.mxu0 %v909
        %v911 = vand.u32 %v747, 4294901760
        %v912 = vsub.f32 %v747, %v911
        %v913 = vand.u32 %v912, 4294901760
        %914 = vmatmul.f32.gmra.mxu0 %v913
        %v915 = vpop.f32.mrf.mxu0
        %v916 = vadd.f32 %v876, %v915
        %v917 = vand.u32 %v750, 4294901760
        %v918 = vsub.f32 %v750, %v917
        %v919 = vand.u32 %v918, 4294901760
        %920 = vmatmul.f32.gmra.mxu0 %v919
        %v921 = vpop.f32.mrf.mxu0
        %v922 = vadd.f32 %v881, %v921
        %v923 = vand.u32 %v753, 4294901760
        %v924 = vsub.f32 %v753, %v923
        %v925 = vand.u32 %v924, 4294901760
        %926 = vmatmul.f32.gmra.mxu0 %v925
        %v927 = vpop.f32.mrf.mxu0
        %v928 = vadd.f32 %v886, %v927
        %v929 = vand.u32 %v756, 4294901760
        %v930 = vsub.f32 %v756, %v929
        %v931 = vand.u32 %v930, 4294901760
        %932 = vmatmul.f32.gmra.mxu0 %v931
        %v933 = vpop.f32.mrf.mxu0
        %v934 = vadd.f32 %v891, %v933
        %935 = vdwg.mxu0
        %936 = vmatpush.msra.mxu0 0.0
        %937 = vmatpush.msra.mxu0 0.0
        %938 = vmatpush.msra.mxu0 0.0
        %939 = vmatpush.msra.mxu0 0.0
        %940 = vmatpush.msra.mxu0 0.0
        %941 = vmatpush.msra.mxu0 0.0
        %942 = vmatpush.msra.mxu0 0.0
        %943 = vmatpush.msra.mxu0 0.0
        %944 = vmatpush.msra.mxu0 0.0
        %945 = vmatpush.msra.mxu0 0.0
        %946 = vmatpush.msra.mxu0 0.0
        %947 = vmatpush.msra.mxu0 0.0
        %948 = vmatpush.msra.mxu0 0.0
        %949 = vmatpush.msra.mxu0 0.0
        %v950 = vand.u32 %v197, 4294901760
        %v951 = vsub.f32 %v197, %v950
        %v952 = vand.u32 %v951, 4294901760
        %953 = vmatpush.msra.mxu0 %v952
        %v954 = vand.u32 %v196, 4294901760
        %v955 = vsub.f32 %v196, %v954
        %v956 = vand.u32 %v955, 4294901760
        %957 = vmatpush.msra.mxu0 %v956
        %v958 = vand.u32 %v747, 4294901760
        %959 = vmatmul.f32.gmra.mxu0 %v958
        %v960 = vpop.f32.mrf.mxu0
        %v961 = vadd.f32 %v916, %v960
        %v962 = vand.u32 %v750, 4294901760
        %963 = vmatmul.f32.gmra.mxu0 %v962
        %v964 = vpop.f32.mrf.mxu0
        %v965 = vadd.f32 %v922, %v964
        %v966 = vand.u32 %v753, 4294901760
        %967 = vmatmul.f32.gmra.mxu0 %v966
        %v968 = vpop.f32.mrf.mxu0
        %v969 = vadd.f32 %v928, %v968
        %v970 = vand.u32 %v756, 4294901760
        %971 = vmatmul.f32.gmra.mxu0 %v970
        %v972 = vpop.f32.mrf.mxu0
        %v973 = vadd.f32 %v934, %v972
        %974 = vdwg.mxu0
        %975 = vmatpush.msra.mxu0 0.0
        %976 = vmatpush.msra.mxu0 0.0
        %977 = vmatpush.msra.mxu0 0.0
        %978 = vmatpush.msra.mxu0 0.0
        %979 = vmatpush.msra.mxu0 0.0
        %980 = vmatpush.msra.mxu0 0.0
        %981 = vmatpush.msra.mxu0 0.0
        %982 = vmatpush.msra.mxu0 0.0
        %983 = vmatpush.msra.mxu0 0.0
        %984 = vmatpush.msra.mxu0 0.0
        %985 = vmatpush.msra.mxu0 0.0
        %986 = vmatpush.msra.mxu0 0.0
        %987 = vmatpush.msra.mxu0 0.0
        %988 = vmatpush.msra.mxu0 0.0
        %v989 = vand.u32 %v197, 4294901760
        %990 = vmatpush.msra.mxu0 %v989
        %v991 = vand.u32 %v196, 4294901760
        %992 = vmatpush.msra.mxu0 %v991
        %v993 = vand.u32 %v747, 4294901760
        %994 = vmatmul.f32.gmra.mxu0 %v993
        %v995 = vpop.f32.mrf.mxu0
        %v996 = vadd.f32 %v961, %v995
        %v997 = vand.u32 %v750, 4294901760
        %998 = vmatmul.f32.gmra.mxu0 %v997
        %v999 = vpop.f32.mrf.mxu0
        %v1000 = vadd.f32 %v965, %v999
        %v1001 = vand.u32 %v753, 4294901760
        %1002 = vmatmul.f32.gmra.mxu0 %v1001
        %v1003 = vpop.f32.mrf.mxu0
        %v1004 = vadd.f32 %v969, %v1003
        %v1005 = vand.u32 %v756, 4294901760
        %1006 = vmatmul.f32.gmra.mxu0 %v1005
        %v1007 = vpop.f32.mrf.mxu0
        %v1008 = vadd.f32 %v973, %v1007
        %1009 = vdwg.mxu0
        %s1010 = scalar_lea.vmem %s180, 64 [#allocation5]
        %1011 = vst.msk [vmem:[%s1010] sm:$0xff] %vm476, %v996
        %1012 = vst.msk [vmem:[%s1010 + $0x8] sm:$0xff] %vm476, %v1000
        %1013 = vst.msk [vmem:[%s1010 + $0x10] sm:$0xff] %vm476, %v1004
        %1014 = vst.msk [vmem:[%s1010 + $0x18] sm:$0xff] %vm476, %v1008
        %1015 = vmatpush.msra.mxu0 0.0
        %1016 = vmatpush.msra.mxu0 0.0
        %1017 = vmatpush.msra.mxu0 0.0
        %1018 = vmatpush.msra.mxu0 0.0
        %1019 = vmatpush.msra.mxu0 0.0
        %1020 = vmatpush.msra.mxu0 0.0
        %1021 = vmatpush.msra.mxu0 0.0
        %1022 = vmatpush.msra.mxu0 0.0
        %1023 = vmatpush.msra.mxu0 0.0
        %1024 = vmatpush.msra.mxu0 0.0
        %1025 = vmatpush.msra.mxu0 0.0
        %1026 = vmatpush.msra.mxu0 0.0
        %1027 = vmatpush.msra.mxu0 0.0
        %1028 = vmatpush.msra.mxu0 0.0
        %v1029 = vand.u32 %v203, 4294901760
        %1030 = vmatpush.msra.mxu0 %v1029
        %v1031 = vand.u32 %v202, 4294901760
        %1032 = vmatpush.msra.mxu0 %v1031
        %v1033 = vand.u32 %v747, 4294901760
        %v1034 = vsub.f32 %v747, %v1033
        %v1035 = vand.u32 %v1034, 4294901760
        %v1036 = vsub.f32 %v1034, %v1035
        %v1037 = vand.u32 %v1036, 4294901760
        %1038 = vmatmul.f32.gmra.mxu0 %v1037
        %v1039 = vpop.f32.mrf.mxu0
        %v1040 = vadd.f32 0.0, %v1039
        %v1041 = vand.u32 %v750, 4294901760
        %v1042 = vsub.f32 %v750, %v1041
        %v1043 = vand.u32 %v1042, 4294901760
        %v1044 = vsub.f32 %v1042, %v1043
        %v1045 = vand.u32 %v1044, 4294901760
        %1046 = vmatmul.f32.gmra.mxu0 %v1045
        %v1047 = vpop.f32.mrf.mxu0
        %v1048 = vadd.f32 0.0, %v1047
        %v1049 = vand.u32 %v753, 4294901760
        %v1050 = vsub.f32 %v753, %v1049
        %v1051 = vand.u32 %v1050, 4294901760
        %v1052 = vsub.f32 %v1050, %v1051
        %v1053 = vand.u32 %v1052, 4294901760
        %1054 = vmatmul.f32.gmra.mxu0 %v1053
        %v1055 = vpop.f32.mrf.mxu0
        %v1056 = vadd.f32 0.0, %v1055
        %v1057 = vand.u32 %v756, 4294901760
        %v1058 = vsub.f32 %v756, %v1057
        %v1059 = vand.u32 %v1058, 4294901760
        %v1060 = vsub.f32 %v1058, %v1059
        %v1061 = vand.u32 %v1060, 4294901760
        %1062 = vmatmul.f32.gmra.mxu0 %v1061
        %v1063 = vpop.f32.mrf.mxu0
        %v1064 = vadd.f32 0.0, %v1063
        %1065 = vdwg.mxu0
        %1066 = vmatpush.msra.mxu0 0.0
        %1067 = vmatpush.msra.mxu0 0.0
        %1068 = vmatpush.msra.mxu0 0.0
        %1069 = vmatpush.msra.mxu0 0.0
        %1070 = vmatpush.msra.mxu0 0.0
        %1071 = vmatpush.msra.mxu0 0.0
        %1072 = vmatpush.msra.mxu0 0.0
        %1073 = vmatpush.msra.mxu0 0.0
        %1074 = vmatpush.msra.mxu0 0.0
        %1075 = vmatpush.msra.mxu0 0.0
        %1076 = vmatpush.msra.mxu0 0.0
        %1077 = vmatpush.msra.mxu0 0.0
        %1078 = vmatpush.msra.mxu0 0.0
        %1079 = vmatpush.msra.mxu0 0.0
        %v1080 = vand.u32 %v203, 4294901760
        %v1081 = vsub.f32 %v203, %v1080
        %v1082 = vand.u32 %v1081, 4294901760
        %v1083 = vsub.f32 %v1081, %v1082
        %v1084 = vand.u32 %v1083, 4294901760
        %1085 = vmatpush.msra.mxu0 %v1084
        %v1086 = vand.u32 %v202, 4294901760
        %v1087 = vsub.f32 %v202, %v1086
        %v1088 = vand.u32 %v1087, 4294901760
        %v1089 = vsub.f32 %v1087, %v1088
        %v1090 = vand.u32 %v1089, 4294901760
        %1091 = vmatpush.msra.mxu0 %v1090
        %v1092 = vand.u32 %v747, 4294901760
        %1093 = vmatmul.f32.gmra.mxu0 %v1092
        %v1094 = vpop.f32.mrf.mxu0
        %v1095 = vadd.f32 %v1040, %v1094
        %v1096 = vand.u32 %v750, 4294901760
        %1097 = vmatmul.f32.gmra.mxu0 %v1096
        %v1098 = vpop.f32.mrf.mxu0
        %v1099 = vadd.f32 %v1048, %v1098
        %v1100 = vand.u32 %v753, 4294901760
        %1101 = vmatmul.f32.gmra.mxu0 %v1100
        %v1102 = vpop.f32.mrf.mxu0
        %v1103 = vadd.f32 %v1056, %v1102
        %v1104 = vand.u32 %v756, 4294901760
        %1105 = vmatmul.f32.gmra.mxu0 %v1104
        %v1106 = vpop.f32.mrf.mxu0
        %v1107 = vadd.f32 %v1064, %v1106
        %1108 = vdwg.mxu0
        %1109 = vmatpush.msra.mxu0 0.0
        %1110 = vmatpush.msra.mxu0 0.0
        %1111 = vmatpush.msra.mxu0 0.0
        %1112 = vmatpush.msra.mxu0 0.0
        %1113 = vmatpush.msra.mxu0 0.0
        %1114 = vmatpush.msra.mxu0 0.0
        %1115 = vmatpush.msra.mxu0 0.0
        %1116 = vmatpush.msra.mxu0 0.0
        %1117 = vmatpush.msra.mxu0 0.0
        %1118 = vmatpush.msra.mxu0 0.0
        %1119 = vmatpush.msra.mxu0 0.0
        %1120 = vmatpush.msra.mxu0 0.0
        %1121 = vmatpush.msra.mxu0 0.0
        %1122 = vmatpush.msra.mxu0 0.0
        %v1123 = vand.u32 %v203, 4294901760
        %v1124 = vsub.f32 %v203, %v1123
        %1125 = vmatpush.msra.mxu0 %v1124
        %v1126 = vand.u32 %v202, 4294901760
        %v1127 = vsub.f32 %v202, %v1126
        %1128 = vmatpush.msra.mxu0 %v1127
        %v1129 = vand.u32 %v747, 4294901760
        %v1130 = vsub.f32 %v747, %v1129
        %1131 = vmatmul.f32.gmra.mxu0 %v1130
        %v1132 = vpop.f32.mrf.mxu0
        %v1133 = vadd.f32 %v1095, %v1132
        %v1134 = vand.u32 %v750, 4294901760
        %v1135 = vsub.f32 %v750, %v1134
        %1136 = vmatmul.f32.gmra.mxu0 %v1135
        %v1137 = vpop.f32.mrf.mxu0
        %v1138 = vadd.f32 %v1099, %v1137
        %v1139 = vand.u32 %v753, 4294901760
        %v1140 = vsub.f32 %v753, %v1139
        %1141 = vmatmul.f32.gmra.mxu0 %v1140
        %v1142 = vpop.f32.mrf.mxu0
        %v1143 = vadd.f32 %v1103, %v1142
        %v1144 = vand.u32 %v756, 4294901760
        %v1145 = vsub.f32 %v756, %v1144
        %1146 = vmatmul.f32.gmra.mxu0 %v1145
        %v1147 = vpop.f32.mrf.mxu0
        %v1148 = vadd.f32 %v1107, %v1147
        %1149 = vdwg.mxu0
        %1150 = vmatpush.msra.mxu0 0.0
        %1151 = vmatpush.msra.mxu0 0.0
        %1152 = vmatpush.msra.mxu0 0.0
        %1153 = vmatpush.msra.mxu0 0.0
        %1154 = vmatpush.msra.mxu0 0.0
        %1155 = vmatpush.msra.mxu0 0.0
        %1156 = vmatpush.msra.mxu0 0.0
        %1157 = vmatpush.msra.mxu0 0.0
        %1158 = vmatpush.msra.mxu0 0.0
        %1159 = vmatpush.msra.mxu0 0.0
        %1160 = vmatpush.msra.mxu0 0.0
        %1161 = vmatpush.msra.mxu0 0.0
        %1162 = vmatpush.msra.mxu0 0.0
        %1163 = vmatpush.msra.mxu0 0.0
        %v1164 = vand.u32 %v203, 4294901760
        %1165 = vmatpush.msra.mxu0 %v1164
        %v1166 = vand.u32 %v202, 4294901760
        %1167 = vmatpush.msra.mxu0 %v1166
        %v1168 = vand.u32 %v747, 4294901760
        %v1169 = vsub.f32 %v747, %v1168
        %v1170 = vand.u32 %v1169, 4294901760
        %1171 = vmatmul.f32.gmra.mxu0 %v1170
        %v1172 = vpop.f32.mrf.mxu0
        %v1173 = vadd.f32 %v1133, %v1172
        %v1174 = vand.u32 %v750, 4294901760
        %v1175 = vsub.f32 %v750, %v1174
        %v1176 = vand.u32 %v1175, 4294901760
        %1177 = vmatmul.f32.gmra.mxu0 %v1176
        %v1178 = vpop.f32.mrf.mxu0
        %v1179 = vadd.f32 %v1138, %v1178
        %v1180 = vand.u32 %v753, 4294901760
        %v1181 = vsub.f32 %v753, %v1180
        %v1182 = vand.u32 %v1181, 4294901760
        %1183 = vmatmul.f32.gmra.mxu0 %v1182
        %v1184 = vpop.f32.mrf.mxu0
        %v1185 = vadd.f32 %v1143, %v1184
        %v1186 = vand.u32 %v756, 4294901760
        %v1187 = vsub.f32 %v756, %v1186
        %v1188 = vand.u32 %v1187, 4294901760
        %1189 = vmatmul.f32.gmra.mxu0 %v1188
        %v1190 = vpop.f32.mrf.mxu0
        %v1191 = vadd.f32 %v1148, %v1190
        %1192 = vdwg.mxu0
        %1193 = vmatpush.msra.mxu0 0.0
        %1194 = vmatpush.msra.mxu0 0.0
        %1195 = vmatpush.msra.mxu0 0.0
        %1196 = vmatpush.msra.mxu0 0.0
        %1197 = vmatpush.msra.mxu0 0.0
        %1198 = vmatpush.msra.mxu0 0.0
        %1199 = vmatpush.msra.mxu0 0.0
        %1200 = vmatpush.msra.mxu0 0.0
        %1201 = vmatpush.msra.mxu0 0.0
        %1202 = vmatpush.msra.mxu0 0.0
        %1203 = vmatpush.msra.mxu0 0.0
        %1204 = vmatpush.msra.mxu0 0.0
        %1205 = vmatpush.msra.mxu0 0.0
        %1206 = vmatpush.msra.mxu0 0.0
        %v1207 = vand.u32 %v203, 4294901760
        %v1208 = vsub.f32 %v203, %v1207
        %v1209 = vand.u32 %v1208, 4294901760
        %1210 = vmatpush.msra.mxu0 %v1209
        %v1211 = vand.u32 %v202, 4294901760
        %v1212 = vsub.f32 %v202, %v1211
        %v1213 = vand.u32 %v1212, 4294901760
        %1214 = vmatpush.msra.mxu0 %v1213
        %v1215 = vand.u32 %v747, 4294901760
        %1216 = vmatmul.f32.gmra.mxu0 %v1215
        %v1217 = vpop.f32.mrf.mxu0
        %v1218 = vadd.f32 %v1173, %v1217
        %v1219 = vand.u32 %v750, 4294901760
        %1220 = vmatmul.f32.gmra.mxu0 %v1219
        %v1221 = vpop.f32.mrf.mxu0
        %v1222 = vadd.f32 %v1179, %v1221
        %v1223 = vand.u32 %v753, 4294901760
        %1224 = vmatmul.f32.gmra.mxu0 %v1223
        %v1225 = vpop.f32.mrf.mxu0
        %v1226 = vadd.f32 %v1185, %v1225
        %v1227 = vand.u32 %v756, 4294901760
        %1228 = vmatmul.f32.gmra.mxu0 %v1227
        %v1229 = vpop.f32.mrf.mxu0
        %v1230 = vadd.f32 %v1191, %v1229
        %1231 = vdwg.mxu0
        %1232 = vmatpush.msra.mxu0 0.0
        %1233 = vmatpush.msra.mxu0 0.0
        %1234 = vmatpush.msra.mxu0 0.0
        %1235 = vmatpush.msra.mxu0 0.0
        %1236 = vmatpush.msra.mxu0 0.0
        %1237 = vmatpush.msra.mxu0 0.0
        %1238 = vmatpush.msra.mxu0 0.0
        %1239 = vmatpush.msra.mxu0 0.0
        %1240 = vmatpush.msra.mxu0 0.0
        %1241 = vmatpush.msra.mxu0 0.0
        %1242 = vmatpush.msra.mxu0 0.0
        %1243 = vmatpush.msra.mxu0 0.0
        %1244 = vmatpush.msra.mxu0 0.0
        %1245 = vmatpush.msra.mxu0 0.0
        %v1246 = vand.u32 %v203, 4294901760
        %1247 = vmatpush.msra.mxu0 %v1246
        %v1248 = vand.u32 %v202, 4294901760
        %1249 = vmatpush.msra.mxu0 %v1248
        %v1250 = vand.u32 %v747, 4294901760
        %1251 = vmatmul.f32.gmra.mxu0 %v1250
        %v1252 = vpop.f32.mrf.mxu0
        %v1253 = vadd.f32 %v1218, %v1252
        %v1254 = vand.u32 %v750, 4294901760
        %1255 = vmatmul.f32.gmra.mxu0 %v1254
        %v1256 = vpop.f32.mrf.mxu0
        %v1257 = vadd.f32 %v1222, %v1256
        %v1258 = vand.u32 %v753, 4294901760
        %1259 = vmatmul.f32.gmra.mxu0 %v1258
        %v1260 = vpop.f32.mrf.mxu0
        %v1261 = vadd.f32 %v1226, %v1260
        %v1262 = vand.u32 %v756, 4294901760
        %1263 = vmatmul.f32.gmra.mxu0 %v1262
        %v1264 = vpop.f32.mrf.mxu0
        %v1265 = vadd.f32 %v1230, %v1264
        %1266 = vdwg.mxu0
        %s1267 = scalar_lea.vmem %s180, 96 [#allocation5]
        %1268 = vst.msk [vmem:[%s1267] sm:$0xff] %vm476, %v1253
        %1269 = vst.msk [vmem:[%s1267 + $0x8] sm:$0xff] %vm476, %v1257
        %1270 = vst.msk [vmem:[%s1267 + $0x10] sm:$0xff] %vm476, %v1261
        %1271 = vst.msk [vmem:[%s1267 + $0x18] sm:$0xff] %vm476, %v1265
        %s1272 = sand.u32 %s90, 1
        %s1273 = scalar_lea.sflag [#allocation4], %s1272
        %s1274 = sand.u32 %s90, 1
        %s1275 = smul.addr %s1274, 128
        %s1276 = scalar_lea.vmem [#allocation5], %s1275
        // Predicated region
        $region29: #{tpu_custom_call.1} parent=23 // pred_check
          %p1277 = pneg %p100
        $region30: #{tpu_custom_call.1} parent=23 // pred_check_branch
          %1279 = sbr.rel (%p1277) target = $region32
        $region31: #{tpu_custom_call.1} parent=23 // pred_region
          %s1280 = smul.u32 4, %s25
          %1282 = vsyncadd %s1273, 0
          %s1283 = sadd.s32 %s27, %s26
          %s1284 = sadd.s32 %s1283, %s1280
          %s1285 = smul.addr %s24, 16
          %s1286 = sadd.s32 %s1284, %s1285
          %s1287 = smul.addr %s1286, 8
          %s1288 = scalar_lea.hbm %s1, %s1287
          %s1289 = sshll.u32 %s1276, 4
          %s1290 = int_to_ptr.vmem [resolvable:$true] %s1289
          %s1291 = sshll.u32 %s1288, 4
          %s1292 = int_to_ptr.hbm [resolvable:$true] %s1291
          %1297 = dma.vmem_to_hbm [thread:$0]  %s1290, 2048, %s1292, %s1273, 128, 128, 8
        $region32: #{tpu_custom_call.1} parent=23 // pred_fallthru
          _
      $region24: #{tpu_custom_call.1} parent=5 // pred_fallthru
        _
      %p1298 = scmp.le.s32.totalorder 2, %s13
      // Predicated region
      $region33: #{tpu_custom_call.1} parent=5 // pred_check
        %p1299 = pneg %p1298
      $region34: #{tpu_custom_call.1} parent=5 // pred_check_branch
        %1301 = sbr.rel (%p1299) target = $region36
      $region35: #{tpu_custom_call.1} parent=5 // pred_region
        %s1302 = ssub.s32 %s13, 2
        // Predicated region
        $region37: #{tpu_custom_call.1} parent=35 // pred_check
          %p1303 = pneg %p106
        $region38: #{tpu_custom_call.1} parent=35 // pred_check_branch
          %1305 = sbr.rel (%p1303) target = $region40
        $region39: #{tpu_custom_call.1} parent=35 // pred_region
          %s1306 = sand.u32 %s91, 1
          %s1307 = scalar_lea.sflag [#allocation4], %s1306
          %s1308 = sand.u32 %s91, 1
          %s1309 = smul.addr %s1308, 128
          %s1310 = scalar_lea.vmem [#allocation5], %s1309
          %1312 = dma.done %s1307, 2048
        $region40: #{tpu_custom_call.1} parent=35 // pred_fallthru
          _
      $region36: #{tpu_custom_call.1} parent=5 // pred_fallthru
        _
    $region6: #{tpu_custom_call.1} parent=1 // loop_footer
      %s17 = sadd.s32 1, %s13
    $region7: #{tpu_custom_call.1} parent=1 // loop_footer_branch
      %12 = sbr.rel target = $region3
    $region8: #{tpu_custom_call.1} parent=1 // loop_exit
      _
    %1313 = vsyncpa [#allocation3], 1
    %s1314 = scalar_lea.sflag [#allocation3], 1
    %1315 = vsyncpa %s1314, 1
    %1316 = vsyncpa [#allocation4], 1
    %s1317 = scalar_lea.sflag [#allocation4], 1
    %1318 = vsyncpa %s1317, 1

</llo_original>
